<compile_context>
chip_gen: v7x
topology: tpu7x:2x2x1
jax: 0.10.0
libtpu: 0.0.40
codegen_flags: <defaults>
</compile_context>

<pallas_src>
import functools

import jax
import jax.numpy as jnp
from jax import lax
from jax.experimental import pallas as pl
from jax.experimental.pallas import tpu as pltpu

_SQRT_HALF = 0.7071067811865476
_LN_EPS = 1e-5


def _gelu(h, approximate):
    if approximate:
        # tanh GELU lowers to the EUP (free slot); tiny numeric delta vs. erf.
        return jax.nn.gelu(h, approximate=True)
    # exact / erf GELU, same as torch.nn.GELU() default
    return 0.5 * h * (1.0 + lax.erf(h * _SQRT_HALF))


def _layernorm(x_f32, gamma, beta):
    m = jnp.mean(x_f32, axis=-1, keepdims=True)
    c = x_f32 - m
    v = jnp.mean(c * c, axis=-1, keepdims=True)
    return c * lax.rsqrt(v + _LN_EPS) * gamma + beta


# ------------------------------- fused kernel --------------------------------
def _make_mixer_kernel(matmul_dtype, approximate_gelu):
    def kernel(x_ref, g_ref, be_ref,
               tw1_ref, tb1_ref, tw2_ref, tb2_ref,
               cw1_ref, cb1_ref, cw2_ref, cb2_ref, o_ref):
        x = x_ref[0].astype(jnp.float32)                          # (S, C)
        g = g_ref[...]                                            # (1, C)
        be = be_ref[...]                                          # (1, C)

        # ---- token-mixing branch: out1 = x + MLP_tok(LN(x)^T)^T -------------
        y = _layernorm(x, g, be)                                  # (S, C)
        # h[t, c] = sum_s W1[s, t] * y[s, c]   (lhs^T @ rhs on the MXU;
        # contraction over S keeps C lane-dense, no transposes anywhere).
        h = lax.dot_general(tw1_ref[...], y.astype(matmul_dtype),
                            (((0,), (0,)), ((), ())),
                            preferred_element_type=jnp.float32)   # (TH, C)
        h = _gelu(h + tb1_ref[...], approximate_gelu)             # + (TH, 1)
        # tok[s, c] = sum_t W2[t, s] * h[t, c]
        tok = lax.dot_general(tw2_ref[...], h.astype(matmul_dtype),
                              (((0,), (0,)), ((), ())),
                              preferred_element_type=jnp.float32)  # (S, C)
        out1 = x + tok + tb2_ref[...]                              # + (S, 1)

        # ---- channel-mixing branch: out = out1 + MLP_ch(LN(out1)) -----------
        y2 = _layernorm(out1, g, be)
        h2 = jnp.dot(y2.astype(matmul_dtype), cw1_ref[...],
                     preferred_element_type=jnp.float32) + cb1_ref[...]  # (S, CH)
        h2 = _gelu(h2, approximate_gelu)
        z = jnp.dot(h2.astype(matmul_dtype), cw2_ref[...],
                    preferred_element_type=jnp.float32) + cb2_ref[...]   # (S, C)
        o_ref[0] = (out1 + z).astype(o_ref.dtype)

    return kernel


# ------------------------------- wrapper --------------------------------------
def _vmem_limit_bytes(requested):
    # Generation-aware scoped-VMEM budget: ~80% of physical per-core VMEM
    # (leaves headroom for compiler-internal scratch).  Fallback = 64 MiB
    # (v7x physical, the smallest across v5e/v6e/v7x).
    cap = None
    try:
        cap = getattr(pltpu.get_tpu_info(), "vmem_capacity_bytes", None)
    except Exception:
        cap = None
    if not cap:
        cap = 64 << 20
    budget = int(cap * 0.8)
    return int(min(max(int(requested), 32 << 20), budget))


@functools.partial(jax.jit, static_argnames=("matmul_dtype_name", "approximate_gelu"))
def mixer_block(x, ln_gamma, ln_beta,
                tok_w1, tok_b1, tok_w2, tok_b2,
                ch_w1, ch_b1, ch_w2, ch_b2,
                *, matmul_dtype_name="float32", approximate_gelu=False):
    """x: [B, S, C]; token MLP mixes S (tokens), channel MLP mixes C (channels)."""
    B, S, C = x.shape
    TH = tok_w1.shape[1]
    CH = ch_w1.shape[1]
    mm_dtype = jnp.dtype(matmul_dtype_name)
    f32 = jnp.float32

    # LN params / biases stay f32 (added after f32 accumulation); matmul weights
    # are pre-cast so their DMA bytes + resident VMEM shrink in bf16 mode.
    g = ln_gamma.reshape(1, C).astype(f32)
    be = ln_beta.reshape(1, C).astype(f32)
    tw1 = tok_w1.astype(mm_dtype)                 # (S, TH)
    tb1 = tok_b1.reshape(TH, 1).astype(f32)
    tw2 = tok_w2.astype(mm_dtype)                 # (TH, S)
    tb2 = tok_b2.reshape(S, 1).astype(f32)
    cw1 = ch_w1.astype(mm_dtype)                  # (C, CH)
    cb1 = ch_b1.reshape(1, CH).astype(f32)
    cw2 = ch_w2.astype(mm_dtype)                  # (CH, C)
    cb2 = ch_b2.reshape(1, C).astype(f32)

    x_item = jnp.dtype(x.dtype).itemsize
    w_item = jnp.dtype(mm_dtype).itemsize
    weight_elems = S * TH + TH * S + C * CH + CH * C
    vmem_req = (2 * 2 * S * C * x_item                       # double-buffered x/out blocks
                + 2 * w_item * weight_elems                   # resident weights (pipeliner x2)
                + 4 * (4 * S * C + TH * C + S * CH)           # f32 activations / accumulators
                + 4 * (2 * C + TH + S + CH + C))              # LN params + biases

    flops = B * (4 * S * TH * C + 4 * S * C * CH) + 16 * B * S * C
    trans = B * (TH * C + S * CH + 2 * S)
    bytes_acc = (2 * B * S * C * x_item
                 + w_item * weight_elems
                 + 4 * (2 * C + TH + S + CH + C))

    def resident(arr):
        # Constant-index (weight / bias / LN-param) block, whole array resident.
        # NOTE: for production-size channel weights on v7x, add
        # pipeline_mode=pl.Buffered(1) here to avoid double-buffering them.
        return pl.BlockSpec(arr.shape, lambda b: (0,) * arr.ndim)

    kernel = _make_mixer_kernel(mm_dtype, approximate_gelu)

    out = pl.pallas_call(
        kernel,
        out_shape=jax.ShapeDtypeStruct((B, S, C), x.dtype),
        grid_spec=pltpu.PrefetchScalarGridSpec(
            num_scalar_prefetch=0,
            grid=(B,),
            in_specs=[
                pl.BlockSpec((1, S, C), lambda b: (b, 0, 0)),   # x, one batch elem
                resident(g), resident(be),
                resident(tw1), resident(tb1), resident(tw2), resident(tb2),
                resident(cw1), resident(cb1), resident(cw2), resident(cb2),
            ],
            out_specs=pl.BlockSpec((1, S, C), lambda b: (b, 0, 0)),
        ),
        compiler_params=pltpu.CompilerParams(
            dimension_semantics=("parallel",),
            vmem_limit_bytes=_vmem_limit_bytes(vmem_req),
        ),
        cost_estimate=pl.CostEstimate(
            flops=flops, transcendentals=trans, bytes_accessed=bytes_acc),
    )(x, g, be, tw1, tb1, tw2, tb2, cw1, cb1, cw2, cb2)
    return out


# ------------------------------ reference -------------------------------------
def reference(x, g, b, tw1, tb1, tw2, tb2, cw1, cb1, cw2, cb2):
    def ln(z):
        m = jnp.mean(z, -1, keepdims=True)
        v = jnp.mean((z - m) ** 2, -1, keepdims=True)
        return (z - m) * lax.rsqrt(v + _LN_EPS) * g + b

    def mlp(z, w1, b1, w2, b2):
        h = z @ w1 + b1
        h = 0.5 * h * (1.0 + lax.erf(h * _SQRT_HALF))
        return h @ w2 + b2

    y = ln(x)
    y = jnp.swapaxes(y, 1, 2)
    y = mlp(y, tw1, tb1, tw2, tb2)
    y = jnp.swapaxes(y, 1, 2)
    out = x + y
    return out + mlp(ln(out), cw1, cb1, cw2, cb2)


if __name__ == "__main__":
    # Small shapes consistent with MixerBlock:
    #   tokens (S) = tokens_mlp_dim = 16, channels (C) = 128 (scaled-down 1024),
    #   tokens_hidden_dim = 32, channels_hidden_dim = 64, batch = 2.
    B, S, C = 2, 16, 128
    TH, CH = 32, 64

    key = jax.random.PRNGKey(0)
    ks = jax.random.split(key, 11)

    x = jax.random.normal(ks[0], (B, S, C), dtype=jnp.float32)
    ln_gamma = 1.0 + 0.1 * jax.random.normal(ks[1], (C,), dtype=jnp.float32)
    ln_beta = 0.1 * jax.random.normal(ks[2], (C,), dtype=jnp.float32)
    # Linear params in (in, out) layout (transpose of nn.Linear.weight).
    tok_w1 = jax.random.normal(ks[3], (S, TH), dtype=jnp.float32) / jnp.sqrt(S)
    tok_b1 = 0.01 * jax.random.normal(ks[4], (TH,), dtype=jnp.float32)
    tok_w2 = jax.random.normal(ks[5], (TH, S), dtype=jnp.float32) / jnp.sqrt(TH)
    tok_b2 = 0.01 * jax.random.normal(ks[6], (S,), dtype=jnp.float32)
    ch_w1 = jax.random.normal(ks[7], (C, CH), dtype=jnp.float32) / jnp.sqrt(C)
    ch_b1 = 0.01 * jax.random.normal(ks[8], (CH,), dtype=jnp.float32)
    ch_w2 = jax.random.normal(ks[9], (CH, C), dtype=jnp.float32) / jnp.sqrt(CH)
    ch_b2 = 0.01 * jax.random.normal(ks[10], (C,), dtype=jnp.float32)

    args = (x, ln_gamma, ln_beta,
            tok_w1, tok_b1, tok_w2, tok_b2,
            ch_w1, ch_b1, ch_w2, ch_b2)

    ref = reference(*args)

    # Exact path (f32 MXU operands, erf GELU) -> tight tolerance vs reference.
    out_f32 = jax.block_until_ready(mixer_block(*args))
    assert out_f32.shape == (B, S, C)
    assert jnp.allclose(out_f32, ref, atol=1e-3, rtol=1e-3), "f32 mismatch vs reference"

    # Production path (bf16 MXU operands, tanh GELU, f32 accumulation) -> loose tol.
    out_bf16 = jax.block_until_ready(
        mixer_block(*args, matmul_dtype_name="bfloat16", approximate_gelu=True))
    assert jnp.allclose(out_bf16, ref, atol=1e-1, rtol=1e-1), "bf16 mismatch vs reference"

    print("KERNEL_OK")
</pallas_src>

<mosaic_0001>
module attributes {stable_mosaic.version = 11 : i64} {
  func.func @kernel(%arg0: i32, %arg1: memref<1x16x128xf32, #tpu.memory_space<vmem>>, %arg2: memref<1x128xf32, #tpu.memory_space<vmem>>, %arg3: memref<1x128xf32, #tpu.memory_space<vmem>>, %arg4: memref<16x32xf32, #tpu.memory_space<vmem>>, %arg5: memref<32x1xf32, #tpu.memory_space<vmem>>, %arg6: memref<32x16xf32, #tpu.memory_space<vmem>>, %arg7: memref<16x1xf32, #tpu.memory_space<vmem>>, %arg8: memref<128x64xf32, #tpu.memory_space<vmem>>, %arg9: memref<1x64xf32, #tpu.memory_space<vmem>>, %arg10: memref<64x128xf32, #tpu.memory_space<vmem>>, %arg11: memref<1x128xf32, #tpu.memory_space<vmem>>, %arg12: memref<1x16x128xf32, #tpu.memory_space<vmem>>) attributes {dimension_semantics = [#tpu.dimension_semantics<parallel>], iteration_bounds = array<i64: 2>, scalar_prefetch = 0 : i64, scratch_operands = 0 : i64, tpu.core_type = #tpu.core_type<tc>, window_params = [{transform_indices = @transform_0, window_bounds = array<i64: 1, 16, 128>}, {pipeline_mode = #tpu.pipeline_mode<synchronous>, transform_indices = @transform_1, window_bounds = array<i64: 1, 128>}, {pipeline_mode = #tpu.pipeline_mode<synchronous>, transform_indices = @transform_2, window_bounds = array<i64: 1, 128>}, {pipeline_mode = #tpu.pipeline_mode<synchronous>, transform_indices = @transform_3, window_bounds = array<i64: 16, 32>}, {pipeline_mode = #tpu.pipeline_mode<synchronous>, transform_indices = @transform_4, window_bounds = array<i64: 32, 1>}, {pipeline_mode = #tpu.pipeline_mode<synchronous>, transform_indices = @transform_5, window_bounds = array<i64: 32, 16>}, {pipeline_mode = #tpu.pipeline_mode<synchronous>, transform_indices = @transform_6, window_bounds = array<i64: 16, 1>}, {pipeline_mode = #tpu.pipeline_mode<synchronous>, transform_indices = @transform_7, window_bounds = array<i64: 128, 64>}, {pipeline_mode = #tpu.pipeline_mode<synchronous>, transform_indices = @transform_8, window_bounds = array<i64: 1, 64>}, {pipeline_mode = #tpu.pipeline_mode<synchronous>, transform_indices = @transform_9, window_bounds = array<i64: 64, 128>}, {pipeline_mode = #tpu.pipeline_mode<synchronous>, transform_indices = @transform_10, window_bounds = array<i64: 1, 128>}, {transform_indices = @transform_11, window_bounds = array<i64: 1, 16, 128>}]} {
    %c0 = arith.constant 0 : index
    %c0_0 = arith.constant 0 : index
    %c0_1 = arith.constant 0 : index
    %0 = vector.load %arg1[%c0, %c0_0, %c0_1] : memref<1x16x128xf32, #tpu.memory_space<vmem>>, vector<1x16x128xf32>
    %1 = vector.shape_cast %0 : vector<1x16x128xf32> to vector<16x128xf32>
    %c0_2 = arith.constant 0 : index
    %c0_3 = arith.constant 0 : index
    %2 = vector.load %arg2[%c0_2, %c0_3] : memref<1x128xf32, #tpu.memory_space<vmem>>, vector<1x128xf32>
    %c0_4 = arith.constant 0 : index
    %c0_5 = arith.constant 0 : index
    %3 = vector.load %arg3[%c0_4, %c0_5] : memref<1x128xf32, #tpu.memory_space<vmem>>, vector<1x128xf32>
    %cst = arith.constant dense<0.000000e+00> : vector<16xf32>
    %4 = vector.multi_reduction <add>, %1, %cst [1] : vector<16x128xf32> to vector<16xf32>
    %5 = vector.shape_cast %4 : vector<16xf32> to vector<16x1xf32>
    %cst_6 = arith.constant 1.280000e+02 : f32
    %6 = vector.broadcast %cst_6 : f32 to vector<16x1xf32>
    %7 = arith.divf %5, %6 : vector<16x1xf32>
    %8 = vector.broadcast %7 : vector<16x1xf32> to vector<16x128xf32>
    %9 = arith.subf %1, %8 : vector<16x128xf32>
    %10 = arith.mulf %9, %9 : vector<16x128xf32>
    %cst_7 = arith.constant dense<0.000000e+00> : vector<16xf32>
    %11 = vector.multi_reduction <add>, %10, %cst_7 [1] : vector<16x128xf32> to vector<16xf32>
    %12 = vector.shape_cast %11 : vector<16xf32> to vector<16x1xf32>
    %cst_8 = arith.constant 1.280000e+02 : f32
    %13 = vector.broadcast %cst_8 : f32 to vector<16x1xf32>
    %14 = arith.divf %12, %13 : vector<16x1xf32>
    %cst_9 = arith.constant 9.99999974E-6 : f32
    %15 = vector.broadcast %cst_9 : f32 to vector<16x1xf32>
    %16 = arith.addf %14, %15 : vector<16x1xf32>
    %17 = math.rsqrt %16 : vector<16x1xf32>
    %18 = vector.broadcast %17 : vector<16x1xf32> to vector<16x128xf32>
    %19 = arith.mulf %9, %18 : vector<16x128xf32>
    %20 = vector.broadcast %2 : vector<1x128xf32> to vector<16x128xf32>
    %21 = arith.mulf %19, %20 : vector<16x128xf32>
    %22 = vector.broadcast %3 : vector<1x128xf32> to vector<16x128xf32>
    %23 = arith.addf %21, %22 : vector<16x128xf32>
    %c0_10 = arith.constant 0 : index
    %c0_11 = arith.constant 0 : index
    %24 = vector.load %arg4[%c0_10, %c0_11] : memref<16x32xf32, #tpu.memory_space<vmem>>, vector<16x32xf32>
    %cst_12 = arith.constant dense<0.000000e+00> : vector<32x128xf32>
    %25 = tpu.matmul %24, %23, %cst_12 {dimension_numbers = #tpu.dot_dimension_numbers<[0], [0], [1], [1], [0, 1, 1, 1], [], []>} : vector<16x32xf32>, vector<16x128xf32>, vector<32x128xf32> -> vector<32x128xf32>
    %c0_13 = arith.constant 0 : index
    %c0_14 = arith.constant 0 : index
    %26 = vector.load %arg5[%c0_13, %c0_14] : memref<32x1xf32, #tpu.memory_space<vmem>>, vector<32x1xf32>
    %27 = vector.broadcast %26 : vector<32x1xf32> to vector<32x128xf32>
    %28 = arith.addf %25, %27 : vector<32x128xf32>
    %cst_15 = arith.constant 5.000000e-01 : f32
    %29 = vector.broadcast %cst_15 : f32 to vector<32x128xf32>
    %30 = arith.mulf %29, %28 : vector<32x128xf32>
    %cst_16 = arith.constant 0.707106769 : f32
    %31 = vector.broadcast %cst_16 : f32 to vector<32x128xf32>
    %32 = arith.mulf %28, %31 : vector<32x128xf32>
    %33 = math.erf %32 : vector<32x128xf32>
    %cst_17 = arith.constant 1.000000e+00 : f32
    %34 = vector.broadcast %cst_17 : f32 to vector<32x128xf32>
    %35 = arith.addf %34, %33 : vector<32x128xf32>
    %36 = arith.mulf %30, %35 : vector<32x128xf32>
    %c0_18 = arith.constant 0 : index
    %c0_19 = arith.constant 0 : index
    %37 = vector.load %arg6[%c0_18, %c0_19] : memref<32x16xf32, #tpu.memory_space<vmem>>, vector<32x16xf32>
    %cst_20 = arith.constant dense<0.000000e+00> : vector<16x128xf32>
    %38 = tpu.matmul %37, %36, %cst_20 {dimension_numbers = #tpu.dot_dimension_numbers<[0], [0], [1], [1], [0, 1, 1, 1], [], []>} : vector<32x16xf32>, vector<32x128xf32>, vector<16x128xf32> -> vector<16x128xf32>
    %39 = arith.addf %1, %38 : vector<16x128xf32>
    %c0_21 = arith.constant 0 : index
    %c0_22 = arith.constant 0 : index
    %40 = vector.load %arg7[%c0_21, %c0_22] : memref<16x1xf32, #tpu.memory_space<vmem>>, vector<16x1xf32>
    %41 = vector.broadcast %40 : vector<16x1xf32> to vector<16x128xf32>
    %42 = arith.addf %39, %41 : vector<16x128xf32>
    %cst_23 = arith.constant dense<0.000000e+00> : vector<16xf32>
    %43 = vector.multi_reduction <add>, %42, %cst_23 [1] : vector<16x128xf32> to vector<16xf32>
    %44 = vector.shape_cast %43 : vector<16xf32> to vector<16x1xf32>
    %cst_24 = arith.constant 1.280000e+02 : f32
    %45 = vector.broadcast %cst_24 : f32 to vector<16x1xf32>
    %46 = arith.divf %44, %45 : vector<16x1xf32>
    %47 = vector.broadcast %46 : vector<16x1xf32> to vector<16x128xf32>
    %48 = arith.subf %42, %47 : vector<16x128xf32>
    %49 = arith.mulf %48, %48 : vector<16x128xf32>
    %cst_25 = arith.constant dense<0.000000e+00> : vector<16xf32>
    %50 = vector.multi_reduction <add>, %49, %cst_25 [1] : vector<16x128xf32> to vector<16xf32>
    %51 = vector.shape_cast %50 : vector<16xf32> to vector<16x1xf32>
    %cst_26 = arith.constant 1.280000e+02 : f32
    %52 = vector.broadcast %cst_26 : f32 to vector<16x1xf32>
    %53 = arith.divf %51, %52 : vector<16x1xf32>
    %cst_27 = arith.constant 9.99999974E-6 : f32
    %54 = vector.broadcast %cst_27 : f32 to vector<16x1xf32>
    %55 = arith.addf %53, %54 : vector<16x1xf32>
    %56 = math.rsqrt %55 : vector<16x1xf32>
    %57 = vector.broadcast %56 : vector<16x1xf32> to vector<16x128xf32>
    %58 = arith.mulf %48, %57 : vector<16x128xf32>
    %59 = vector.broadcast %2 : vector<1x128xf32> to vector<16x128xf32>
    %60 = arith.mulf %58, %59 : vector<16x128xf32>
    %61 = vector.broadcast %3 : vector<1x128xf32> to vector<16x128xf32>
    %62 = arith.addf %60, %61 : vector<16x128xf32>
    %c0_28 = arith.constant 0 : index
    %c0_29 = arith.constant 0 : index
    %63 = vector.load %arg8[%c0_28, %c0_29] : memref<128x64xf32, #tpu.memory_space<vmem>>, vector<128x64xf32>
    %cst_30 = arith.constant dense<0.000000e+00> : vector<16x64xf32>
    %64 = tpu.matmul %62, %63, %cst_30 {dimension_numbers = #tpu.dot_dimension_numbers<[1], [0], [0], [1], [0, 0, 1, 1], [], []>} : vector<16x128xf32>, vector<128x64xf32>, vector<16x64xf32> -> vector<16x64xf32>
    %c0_31 = arith.constant 0 : index
    %c0_32 = arith.constant 0 : index
    %65 = vector.load %arg9[%c0_31, %c0_32] : memref<1x64xf32, #tpu.memory_space<vmem>>, vector<1x64xf32>
    %66 = vector.broadcast %65 : vector<1x64xf32> to vector<16x64xf32>
    %67 = arith.addf %64, %66 : vector<16x64xf32>
    %cst_33 = arith.constant 5.000000e-01 : f32
    %68 = vector.broadcast %cst_33 : f32 to vector<16x64xf32>
    %69 = arith.mulf %68, %67 : vector<16x64xf32>
    %cst_34 = arith.constant 0.707106769 : f32
    %70 = vector.broadcast %cst_34 : f32 to vector<16x64xf32>
    %71 = arith.mulf %67, %70 : vector<16x64xf32>
    %72 = math.erf %71 : vector<16x64xf32>
    %cst_35 = arith.constant 1.000000e+00 : f32
    %73 = vector.broadcast %cst_35 : f32 to vector<16x64xf32>
    %74 = arith.addf %73, %72 : vector<16x64xf32>
    %75 = arith.mulf %69, %74 : vector<16x64xf32>
    %c0_36 = arith.constant 0 : index
    %c0_37 = arith.constant 0 : index
    %76 = vector.load %arg10[%c0_36, %c0_37] : memref<64x128xf32, #tpu.memory_space<vmem>>, vector<64x128xf32>
    %cst_38 = arith.constant dense<0.000000e+00> : vector<16x128xf32>
    %77 = tpu.matmul %75, %76, %cst_38 {dimension_numbers = #tpu.dot_dimension_numbers<[1], [0], [0], [1], [0, 0, 1, 1], [], []>} : vector<16x64xf32>, vector<64x128xf32>, vector<16x128xf32> -> vector<16x128xf32>
    %c0_39 = arith.constant 0 : index
    %c0_40 = arith.constant 0 : index
    %78 = vector.load %arg11[%c0_39, %c0_40] : memref<1x128xf32, #tpu.memory_space<vmem>>, vector<1x128xf32>
    %79 = vector.broadcast %78 : vector<1x128xf32> to vector<16x128xf32>
    %80 = arith.addf %77, %79 : vector<16x128xf32>
    %81 = arith.addf %42, %80 : vector<16x128xf32>
    %c0_41 = arith.constant 0 : index
    %c0_42 = arith.constant 0 : index
    %c0_43 = arith.constant 0 : index
    %82 = vector.load %arg12[%c0_41, %c0_42, %c0_43] : memref<1x16x128xf32, #tpu.memory_space<vmem>>, vector<1x16x128xf32>
    %83 = vector.shape_cast %82 : vector<1x16x128xf32> to vector<16x128xf32>
    %84 = vector.shape_cast %81 : vector<16x128xf32> to vector<1x16x128xf32>
    tpu.vector_store %arg12[%c0_41, %c0_42, %c0_43], %84 {strides = array<i32>} : memref<1x16x128xf32, #tpu.memory_space<vmem>>, vector<1x16x128xf32>,
    return
  }
  func.func @transform_0(%arg0: i32) -> (i32, i32, i32) {
    %c0_i32 = arith.constant 0 : i32
    %c0_i32_0 = arith.constant 0 : i32
    %c0_i32_1 = arith.constant 0 : i32
    return %arg0, %c0_i32, %c0_i32_0 : i32, i32, i32
  }
  func.func @transform_1(%arg0: i32) -> (i32, i32) {
    %c0_i32 = arith.constant 0 : i32
    %c0_i32_0 = arith.constant 0 : i32
    %c0_i32_1 = arith.constant 0 : i32
    return %c0_i32, %c0_i32_0 : i32, i32
  }
  func.func @transform_2(%arg0: i32) -> (i32, i32) {
    %c0_i32 = arith.constant 0 : i32
    %c0_i32_0 = arith.constant 0 : i32
    %c0_i32_1 = arith.constant 0 : i32
    return %c0_i32, %c0_i32_0 : i32, i32
  }
  func.func @transform_3(%arg0: i32) -> (i32, i32) {
    %c0_i32 = arith.constant 0 : i32
    %c0_i32_0 = arith.constant 0 : i32
    %c0_i32_1 = arith.constant 0 : i32
    return %c0_i32, %c0_i32_0 : i32, i32
  }
  func.func @transform_4(%arg0: i32) -> (i32, i32) {
    %c0_i32 = arith.constant 0 : i32
    %c0_i32_0 = arith.constant 0 : i32
    %c0_i32_1 = arith.constant 0 : i32
    return %c0_i32, %c0_i32_0 : i32, i32
  }
  func.func @transform_5(%arg0: i32) -> (i32, i32) {
    %c0_i32 = arith.constant 0 : i32
    %c0_i32_0 = arith.constant 0 : i32
    %c0_i32_1 = arith.constant 0 : i32
    return %c0_i32, %c0_i32_0 : i32, i32
  }
  func.func @transform_6(%arg0: i32) -> (i32, i32) {
    %c0_i32 = arith.constant 0 : i32
    %c0_i32_0 = arith.constant 0 : i32
    %c0_i32_1 = arith.constant 0 : i32
    return %c0_i32, %c0_i32_0 : i32, i32
  }
  func.func @transform_7(%arg0: i32) -> (i32, i32) {
    %c0_i32 = arith.constant 0 : i32
    %c0_i32_0 = arith.constant 0 : i32
    %c0_i32_1 = arith.constant 0 : i32
    return %c0_i32, %c0_i32_0 : i32, i32
  }
  func.func @transform_8(%arg0: i32) -> (i32, i32) {
    %c0_i32 = arith.constant 0 : i32
    %c0_i32_0 = arith.constant 0 : i32
    %c0_i32_1 = arith.constant 0 : i32
    return %c0_i32, %c0_i32_0 : i32, i32
  }
  func.func @transform_9(%arg0: i32) -> (i32, i32) {
    %c0_i32 = arith.constant 0 : i32
    %c0_i32_0 = arith.constant 0 : i32
    %c0_i32_1 = arith.constant 0 : i32
    return %c0_i32, %c0_i32_0 : i32, i32
  }
  func.func @transform_10(%arg0: i32) -> (i32, i32) {
    %c0_i32 = arith.constant 0 : i32
    %c0_i32_0 = arith.constant 0 : i32
    %c0_i32_1 = arith.constant 0 : i32
    return %c0_i32, %c0_i32_0 : i32, i32
  }
  func.func @transform_11(%arg0: i32) -> (i32, i32, i32) {
    %c0_i32 = arith.constant 0 : i32
    %c0_i32_0 = arith.constant 0 : i32
    %c0_i32_1 = arith.constant 0 : i32
    return %arg0, %c0_i32, %c0_i32_0 : i32, i32, i32
  }
}

</mosaic_0001>

<llo_original>
// kernel: mixer_block.1
$region0: #{mixer_block.1}
  #allocation0 [shape = 'u32[]', space=smem, size = 0x4, offset = 0x4, fixed_abs, tag = 'smem constant byte address 0x4 - core index']
  #allocation1 [shape = 'u32[144,128]{1,0:T(1,128)}', space=vmem, size = 0x12000, scoped, tag = 'internal scratch']
  %s0 = inlined_call_operand.vmem [shape: f32[2,16,128], index: 0, kind: input, shape index: {}]
  %s1 = inlined_call_operand.vmem [shape: f32[1,128], index: 1, kind: input, shape index: {}]
  %s2 = inlined_call_operand.vmem [shape: f32[1,128], index: 2, kind: input, shape index: {}]
  %s3 = inlined_call_operand.vmem [shape: f32[16,32], index: 3, kind: input, shape index: {}]
  %s4 = inlined_call_operand.vmem [shape: f32[32,1], index: 4, kind: input, shape index: {}]
  %s5 = inlined_call_operand.vmem [shape: f32[32,16], index: 5, kind: input, shape index: {}]
  %s6 = inlined_call_operand.vmem [shape: f32[16,1], index: 6, kind: input, shape index: {}]
  %s7 = inlined_call_operand.vmem [shape: f32[128,64], index: 7, kind: input, shape index: {}]
  %s8 = inlined_call_operand.vmem [shape: f32[1,64], index: 8, kind: input, shape index: {}]
  %s9 = inlined_call_operand.vmem [shape: f32[64,128], index: 9, kind: input, shape index: {}]
  %s10 = inlined_call_operand.vmem [shape: f32[1,128], index: 10, kind: input, shape index: {}]
  %s11 = inlined_call_operand.hbm [shape: f32[2,16,128], index: 11, kind: output, shape index: {}]
  %s12 = sld [smem:[#allocation0]]
  $region77: #{mixer_block.1} parent=0
    _
  %s14 = ssub.s32 1, %s12
  %s15 = scalar_select 0, %s14, %s12
  $region1: #{mixer_block.1} parent=0
    #allocation2 [shape = 'u8[16384]{0}', space=vmem, size = 0x4000, scoped, tag = 'output window, operand 0']
    #allocation3 [shape = 's32[2]{0}', space=sflag, size = 0x8, scoped, tag = 'scoped memory for mixer_block.1']
    %16 = vsyncpa [#allocation3], 0
    %s17 = scalar_lea.sflag [#allocation3], 1
    %18 = vsyncpa %s17, 0
    loop: start=0, step=1, limit=4
    $region2: #{mixer_block.1} parent=1 // loop_pre_header
      _
    $region3: #{mixer_block.1} parent=1 // loop_header
      %s20 = sphi 0, %s24
      %p21 = scmp.ge.s32.totalorder %s20, 4
      %s30 = sphi 0, %s32
      %s33 = sphi 0, %s30
      %s34 = sphi 0, %s33
      %s50 = sphi 0, %s34
      %s54 = sphi 0, %s54
      %s56 = sphi 0, %s54
      %s57 = sphi 0, %s56
      %s71 = sphi 0, %s57
      %s75 = sphi 0, %s75
      %s77 = sphi 0, %s75
      %s78 = sphi 0, %s77
      %s92 = sphi 0, %s78
      %s96 = sphi 0, %s96
      %s98 = sphi 0, %s96
      %s99 = sphi 0, %s98
      %s113 = sphi 0, %s99
      %s117 = sphi 0, %s117
      %s119 = sphi 0, %s117
      %s120 = sphi 0, %s119
      %s134 = sphi 0, %s120
      %s138 = sphi 0, %s138
      %s140 = sphi 0, %s138
      %s141 = sphi 0, %s140
      %s155 = sphi 0, %s141
      %s159 = sphi 0, %s159
      %s161 = sphi 0, %s159
      %s162 = sphi 0, %s161
      %s176 = sphi 0, %s162
      %s180 = sphi 0, %s180
      %s182 = sphi 0, %s180
      %s183 = sphi 0, %s182
      %s197 = sphi 0, %s183
      %s201 = sphi 0, %s201
      %s203 = sphi 0, %s201
      %s204 = sphi 0, %s203
      %s218 = sphi 0, %s204
      %s222 = sphi 0, %s222
      %s224 = sphi 0, %s222
      %s225 = sphi 0, %s224
      %s239 = sphi 0, %s225
      %s243 = sphi 0, %s243
      %s245 = sphi 0, %s243
      %s246 = sphi 0, %s245
      %s260 = sphi 0, %s246
      %s266 = sphi 0, %s268
      %s269 = sphi 0, %s266
      %s270 = sphi 0, %s269
      %s286 = sphi 0, %s270
    $region4: #{mixer_block.1} parent=1 // loop_header_branch
      %23 = sbr.rel (%p21) target = $region8
    $region5: #{mixer_block.1} parent=1 // loop_body
      %s25 = ssub.s32 %s20, 1
      %s26 = ssub.s32 %s20, 2
      %s27 = sadd.s32 %s20, 1
      %s28 = ssub.s32 %s20, %s27
      %p29 = scmp.eq.s32.totalorder %s28, 0
      %s31 = sadd.s32 %s30, 1
      %s32 = scalar_select %p29, %s30, %s31
      %p35 = pneg %p29
      %p36 = scmp.eq.s32.totalorder %s20, 1
      %p37 = por %p35, %p36
      %p38 = scmp.ne.s32.totalorder %s30, %s33
      %p39 = scmp.eq.s32.totalorder %s20, 0
      %p40 = por %p38, %p39
      %p41 = scmp.ne.s32.totalorder %s30, %s33
      %p42 = scmp.eq.s32.totalorder %s25, 1
      %p43 = por %p41, %p42
      %p44 = scmp.ne.s32.totalorder %s33, %s34
      %p45 = scmp.eq.s32.totalorder %s25, 0
      %p46 = por %p44, %p45
      %p47 = scmp.ne.s32.totalorder %s33, %s34
      %p48 = scmp.eq.s32.totalorder %s26, 1
      %p49 = por %p47, %p48
      %p51 = scmp.ne.s32.totalorder %s34, %s50
      %p52 = scmp.eq.s32.totalorder %s26, 0
      %p53 = por %p51, %p52
      %s55 = sadd.s32 %s54, 1
      %p58 = scmp.eq.s32.totalorder %s20, 1
      %p59 = scmp.ne.s32.totalorder %s54, %s56
      %p60 = scmp.eq.s32.totalorder %s20, 0
      %p61 = por %p59, %p60
      %p62 = scmp.ne.s32.totalorder %s54, %s56
      %p63 = scmp.eq.s32.totalorder %s25, 1
      %p64 = por %p62, %p63
      %p65 = scmp.ne.s32.totalorder %s56, %s57
      %p66 = scmp.eq.s32.totalorder %s25, 0
      %p67 = por %p65, %p66
      %p68 = scmp.ne.s32.totalorder %s56, %s57
      %p69 = scmp.eq.s32.totalorder %s26, 1
      %p70 = por %p68, %p69
      %p72 = scmp.ne.s32.totalorder %s57, %s71
      %p73 = scmp.eq.s32.totalorder %s26, 0
      %p74 = por %p72, %p73
      %s76 = sadd.s32 %s75, 1
      %p79 = scmp.eq.s32.totalorder %s20, 1
      %p80 = scmp.ne.s32.totalorder %s75, %s77
      %p81 = scmp.eq.s32.totalorder %s20, 0
      %p82 = por %p80, %p81
      %p83 = scmp.ne.s32.totalorder %s75, %s77
      %p84 = scmp.eq.s32.totalorder %s25, 1
      %p85 = por %p83, %p84
      %p86 = scmp.ne.s32.totalorder %s77, %s78
      %p87 = scmp.eq.s32.totalorder %s25, 0
      %p88 = por %p86, %p87
      %p89 = scmp.ne.s32.totalorder %s77, %s78
      %p90 = scmp.eq.s32.totalorder %s26, 1
      %p91 = por %p89, %p90
      %p93 = scmp.ne.s32.totalorder %s78, %s92
      %p94 = scmp.eq.s32.totalorder %s26, 0
      %p95 = por %p93, %p94
      %s97 = sadd.s32 %s96, 1
      %p100 = scmp.eq.s32.totalorder %s20, 1
      %p101 = scmp.ne.s32.totalorder %s96, %s98
      %p102 = scmp.eq.s32.totalorder %s20, 0
      %p103 = por %p101, %p102
      %p104 = scmp.ne.s32.totalorder %s96, %s98
      %p105 = scmp.eq.s32.totalorder %s25, 1
      %p106 = por %p104, %p105
      %p107 = scmp.ne.s32.totalorder %s98, %s99
      %p108 = scmp.eq.s32.totalorder %s25, 0
      %p109 = por %p107, %p108
      %p110 = scmp.ne.s32.totalorder %s98, %s99
      %p111 = scmp.eq.s32.totalorder %s26, 1
      %p112 = por %p110, %p111
      %p114 = scmp.ne.s32.totalorder %s99, %s113
      %p115 = scmp.eq.s32.totalorder %s26, 0
      %p116 = por %p114, %p115
      %s118 = sadd.s32 %s117, 1
      %p121 = scmp.eq.s32.totalorder %s20, 1
      %p122 = scmp.ne.s32.totalorder %s117, %s119
      %p123 = scmp.eq.s32.totalorder %s20, 0
      %p124 = por %p122, %p123
      %p125 = scmp.ne.s32.totalorder %s117, %s119
      %p126 = scmp.eq.s32.totalorder %s25, 1
      %p127 = por %p125, %p126
      %p128 = scmp.ne.s32.totalorder %s119, %s120
      %p129 = scmp.eq.s32.totalorder %s25, 0
      %p130 = por %p128, %p129
      %p131 = scmp.ne.s32.totalorder %s119, %s120
      %p132 = scmp.eq.s32.totalorder %s26, 1
      %p133 = por %p131, %p132
      %p135 = scmp.ne.s32.totalorder %s120, %s134
      %p136 = scmp.eq.s32.totalorder %s26, 0
      %p137 = por %p135, %p136
      %s139 = sadd.s32 %s138, 1
      %p142 = scmp.eq.s32.totalorder %s20, 1
      %p143 = scmp.ne.s32.totalorder %s138, %s140
      %p144 = scmp.eq.s32.totalorder %s20, 0
      %p145 = por %p143, %p144
      %p146 = scmp.ne.s32.totalorder %s138, %s140
      %p147 = scmp.eq.s32.totalorder %s25, 1
      %p148 = por %p146, %p147
      %p149 = scmp.ne.s32.totalorder %s140, %s141
      %p150 = scmp.eq.s32.totalorder %s25, 0
      %p151 = por %p149, %p150
      %p152 = scmp.ne.s32.totalorder %s140, %s141
      %p153 = scmp.eq.s32.totalorder %s26, 1
      %p154 = por %p152, %p153
      %p156 = scmp.ne.s32.totalorder %s141, %s155
      %p157 = scmp.eq.s32.totalorder %s26, 0
      %p158 = por %p156, %p157
      %s160 = sadd.s32 %s159, 1
      %p163 = scmp.eq.s32.totalorder %s20, 1
      %p164 = scmp.ne.s32.totalorder %s159, %s161
      %p165 = scmp.eq.s32.totalorder %s20, 0
      %p166 = por %p164, %p165
      %p167 = scmp.ne.s32.totalorder %s159, %s161
      %p168 = scmp.eq.s32.totalorder %s25, 1
      %p169 = por %p167, %p168
      %p170 = scmp.ne.s32.totalorder %s161, %s162
      %p171 = scmp.eq.s32.totalorder %s25, 0
      %p172 = por %p170, %p171
      %p173 = scmp.ne.s32.totalorder %s161, %s162
      %p174 = scmp.eq.s32.totalorder %s26, 1
      %p175 = por %p173, %p174
      %p177 = scmp.ne.s32.totalorder %s162, %s176
      %p178 = scmp.eq.s32.totalorder %s26, 0
      %p179 = por %p177, %p178
      %s181 = sadd.s32 %s180, 1
      %p184 = scmp.eq.s32.totalorder %s20, 1
      %p185 = scmp.ne.s32.totalorder %s180, %s182
      %p186 = scmp.eq.s32.totalorder %s20, 0
      %p187 = por %p185, %p186
      %p188 = scmp.ne.s32.totalorder %s180, %s182
      %p189 = scmp.eq.s32.totalorder %s25, 1
      %p190 = por %p188, %p189
      %p191 = scmp.ne.s32.totalorder %s182, %s183
      %p192 = scmp.eq.s32.totalorder %s25, 0
      %p193 = por %p191, %p192
      %p194 = scmp.ne.s32.totalorder %s182, %s183
      %p195 = scmp.eq.s32.totalorder %s26, 1
      %p196 = por %p194, %p195
      %p198 = scmp.ne.s32.totalorder %s183, %s197
      %p199 = scmp.eq.s32.totalorder %s26, 0
      %p200 = por %p198, %p199
      %s202 = sadd.s32 %s201, 1
      %p205 = scmp.eq.s32.totalorder %s20, 1
      %p206 = scmp.ne.s32.totalorder %s201, %s203
      %p207 = scmp.eq.s32.totalorder %s20, 0
      %p208 = por %p206, %p207
      %p209 = scmp.ne.s32.totalorder %s201, %s203
      %p210 = scmp.eq.s32.totalorder %s25, 1
      %p211 = por %p209, %p210
      %p212 = scmp.ne.s32.totalorder %s203, %s204
      %p213 = scmp.eq.s32.totalorder %s25, 0
      %p214 = por %p212, %p213
      %p215 = scmp.ne.s32.totalorder %s203, %s204
      %p216 = scmp.eq.s32.totalorder %s26, 1
      %p217 = por %p215, %p216
      %p219 = scmp.ne.s32.totalorder %s204, %s218
      %p220 = scmp.eq.s32.totalorder %s26, 0
      %p221 = por %p219, %p220
      %s223 = sadd.s32 %s222, 1
      %p226 = scmp.eq.s32.totalorder %s20, 1
      %p227 = scmp.ne.s32.totalorder %s222, %s224
      %p228 = scmp.eq.s32.totalorder %s20, 0
      %p229 = por %p227, %p228
      %p230 = scmp.ne.s32.totalorder %s222, %s224
      %p231 = scmp.eq.s32.totalorder %s25, 1
      %p232 = por %p230, %p231
      %p233 = scmp.ne.s32.totalorder %s224, %s225
      %p234 = scmp.eq.s32.totalorder %s25, 0
      %p235 = por %p233, %p234
      %p236 = scmp.ne.s32.totalorder %s224, %s225
      %p237 = scmp.eq.s32.totalorder %s26, 1
      %p238 = por %p236, %p237
      %p240 = scmp.ne.s32.totalorder %s225, %s239
      %p241 = scmp.eq.s32.totalorder %s26, 0
      %p242 = por %p240, %p241
      %s244 = sadd.s32 %s243, 1
      %p247 = scmp.eq.s32.totalorder %s20, 1
      %p248 = scmp.ne.s32.totalorder %s243, %s245
      %p249 = scmp.eq.s32.totalorder %s20, 0
      %p250 = por %p248, %p249
      %p251 = scmp.ne.s32.totalorder %s243, %s245
      %p252 = scmp.eq.s32.totalorder %s25, 1
      %p253 = por %p251, %p252
      %p254 = scmp.ne.s32.totalorder %s245, %s246
      %p255 = scmp.eq.s32.totalorder %s25, 0
      %p256 = por %p254, %p255
      %p257 = scmp.ne.s32.totalorder %s245, %s246
      %p258 = scmp.eq.s32.totalorder %s26, 1
      %p259 = por %p257, %p258
      %p261 = scmp.ne.s32.totalorder %s246, %s260
      %p262 = scmp.eq.s32.totalorder %s26, 0
      %p263 = por %p261, %p262
      %s264 = ssub.s32 %s20, %s27
      %p265 = scmp.eq.s32.totalorder %s264, 0
      %s267 = sadd.s32 %s266, 1
      %s268 = scalar_select %p265, %s266, %s267
      %p271 = pneg %p265
      %p272 = scmp.eq.s32.totalorder %s20, 1
      %p273 = por %p271, %p272
      %p274 = scmp.ne.s32.totalorder %s266, %s269
      %p275 = scmp.eq.s32.totalorder %s20, 0
      %p276 = por %p274, %p275
      %p277 = scmp.ne.s32.totalorder %s266, %s269
      %p278 = scmp.eq.s32.totalorder %s25, 1
      %p279 = por %p277, %p278
      %p280 = scmp.ne.s32.totalorder %s269, %s270
      %p281 = scmp.eq.s32.totalorder %s25, 0
      %p282 = por %p280, %p281
      %p283 = scmp.ne.s32.totalorder %s269, %s270
      %p284 = scmp.eq.s32.totalorder %s26, 1
      %p285 = por %p283, %p284
      %p287 = scmp.ne.s32.totalorder %s270, %s286
      %p288 = scmp.eq.s32.totalorder %s26, 0
      %p289 = por %p287, %p288
      %p290 = scmp.le.s32.totalorder 1, %s20
      %p291 = scmp.lt.s32.totalorder %s20, 3
      %p292 = pnand %p290, %p291
      %p293 = pneg %p292
      // Predicated region
      $region9: #{mixer_block.1} parent=5 // pred_check
        _
      $region10: #{mixer_block.1} parent=5 // pred_check_branch
        %295 = sbr.rel (%p292) target = $region12
      $region11: #{mixer_block.1} parent=5 // pred_region
        %s296 = ssub.s32 %s20, 1
        // Predicated region
        $region13: #{mixer_block.1} parent=11 // pred_check
          %p297 = pneg %p67
        $region14: #{mixer_block.1} parent=11 // pred_check_branch
          %299 = sbr.rel (%p297) target = $region16
        $region15: #{mixer_block.1} parent=11 // pred_region
          _
        $region16: #{mixer_block.1} parent=11 // pred_fallthru
          _
        // Predicated region
        $region17: #{mixer_block.1} parent=11 // pred_check
          %p300 = pneg %p88
        $region18: #{mixer_block.1} parent=11 // pred_check_branch
          %302 = sbr.rel (%p300) target = $region20
        $region19: #{mixer_block.1} parent=11 // pred_region
          _
        $region20: #{mixer_block.1} parent=11 // pred_fallthru
          _
        // Predicated region
        $region21: #{mixer_block.1} parent=11 // pred_check
          %p303 = pneg %p109
        $region22: #{mixer_block.1} parent=11 // pred_check_branch
          %305 = sbr.rel (%p303) target = $region24
        $region23: #{mixer_block.1} parent=11 // pred_region
          _
        $region24: #{mixer_block.1} parent=11 // pred_fallthru
          _
        // Predicated region
        $region25: #{mixer_block.1} parent=11 // pred_check
          %p306 = pneg %p130
        $region26: #{mixer_block.1} parent=11 // pred_check_branch
          %308 = sbr.rel (%p306) target = $region28
        $region27: #{mixer_block.1} parent=11 // pred_region
          _
        $region28: #{mixer_block.1} parent=11 // pred_fallthru
          _
        // Predicated region
        $region29: #{mixer_block.1} parent=11 // pred_check
          %p309 = pneg %p151
        $region30: #{mixer_block.1} parent=11 // pred_check_branch
          %311 = sbr.rel (%p309) target = $region32
        $region31: #{mixer_block.1} parent=11 // pred_region
          _
        $region32: #{mixer_block.1} parent=11 // pred_fallthru
          _
        // Predicated region
        $region33: #{mixer_block.1} parent=11 // pred_check
          %p312 = pneg %p172
        $region34: #{mixer_block.1} parent=11 // pred_check_branch
          %314 = sbr.rel (%p312) target = $region36
        $region35: #{mixer_block.1} parent=11 // pred_region
          _
        $region36: #{mixer_block.1} parent=11 // pred_fallthru
          _
        // Predicated region
        $region37: #{mixer_block.1} parent=11 // pred_check
          %p315 = pneg %p193
        $region38: #{mixer_block.1} parent=11 // pred_check_branch
          %317 = sbr.rel (%p315) target = $region40
        $region39: #{mixer_block.1} parent=11 // pred_region
          _
        $region40: #{mixer_block.1} parent=11 // pred_fallthru
          _
        // Predicated region
        $region41: #{mixer_block.1} parent=11 // pred_check
          %p318 = pneg %p214
        $region42: #{mixer_block.1} parent=11 // pred_check_branch
          %320 = sbr.rel (%p318) target = $region44
        $region43: #{mixer_block.1} parent=11 // pred_region
          _
        $region44: #{mixer_block.1} parent=11 // pred_fallthru
          _
        // Predicated region
        $region45: #{mixer_block.1} parent=11 // pred_check
          %p321 = pneg %p235
        $region46: #{mixer_block.1} parent=11 // pred_check_branch
          %323 = sbr.rel (%p321) target = $region48
        $region47: #{mixer_block.1} parent=11 // pred_region
          _
        $region48: #{mixer_block.1} parent=11 // pred_fallthru
          _
        // Predicated region
        $region49: #{mixer_block.1} parent=11 // pred_check
          %p324 = pneg %p256
        $region50: #{mixer_block.1} parent=11 // pred_check_branch
          %326 = sbr.rel (%p324) target = $region52
        $region51: #{mixer_block.1} parent=11 // pred_region
          _
        $region52: #{mixer_block.1} parent=11 // pred_fallthru
          _
      $region12: #{mixer_block.1} parent=5 // pred_fallthru
        _
      %p327 = scmp.lt.s32.totalorder %s20, 2
      // Predicated region
      $region53: #{mixer_block.1} parent=5 // pred_check
        %p328 = pneg %p327
      $region54: #{mixer_block.1} parent=5 // pred_check_branch
        %330 = sbr.rel (%p328) target = $region56
      $region55: #{mixer_block.1} parent=5 // pred_region
        // Predicated region
        $region57: #{mixer_block.1} parent=55 // pred_check
          %p331 = pneg %p40
        $region58: #{mixer_block.1} parent=55 // pred_check_branch
          %333 = sbr.rel (%p331) target = $region60
        $region59: #{mixer_block.1} parent=55 // pred_region
          %p334 = scmp.lt.s32.totalorder %s20, 1
          %s335 = scalar_select %p334, %s20, 1
          %s336 = smul.addr %s335, 2
          %s337 = smul.addr %s336, 8
          %s338 = scalar_lea.vmem %s0, %s337
        $region60: #{mixer_block.1} parent=55 // pred_fallthru
          _
      $region56: #{mixer_block.1} parent=5 // pred_fallthru
        _
      %p339 = scmp.le.s32.totalorder 1, %s20
      %p340 = scmp.lt.s32.totalorder %s20, 3
      %p341 = pnand %p339, %p340
      %p342 = pneg %p341
      // Predicated region
      $region61: #{mixer_block.1} parent=5 // pred_check
        _
      $region62: #{mixer_block.1} parent=5 // pred_check_branch
        %344 = sbr.rel (%p341) target = $region64
      $region63: #{mixer_block.1} parent=5 // pred_region
        %s345 = ssub.s32 %s20, 1
        %p346 = scmp.lt.s32.totalorder %s25, 1
        %s347 = scalar_select %p346, %s25, 1
        %s348 = smul.addr %s347, 2
        %s349 = smul.addr %s348, 8
        %s350 = scalar_lea.vmem %s0, %s349
        %p351 = pneg %p46
        %p352 = pneg %p43
        %p353 = pneg %p67
        %p354 = pneg %p64
        %p355 = pneg %p88
        %p356 = pneg %p85
        %p357 = pneg %p109
        %p358 = pneg %p106
        %p359 = pneg %p130
        %p360 = pneg %p127
        %p361 = pneg %p151
        %p362 = pneg %p148
        %p363 = pneg %p172
        %p364 = pneg %p169
        %p365 = pneg %p193
        %p366 = pneg %p190
        %p367 = pneg %p214
        %p368 = pneg %p211
        %p369 = pneg %p235
        %p370 = pneg %p232
        %p371 = pneg %p256
        %p372 = pneg %p253
        %p373 = pneg %p282
        %p374 = pneg %p279
        %s375 = sand.u32 %s269, 1
        %s376 = scalar_lea.sflag [#allocation3], %s375
        %s377 = sand.u32 %s269, 1
        %s378 = smul.addr %s377, 16
        %s379 = scalar_lea.vmem [#allocation2], %s378
        %p380 = scmp.lt.s32.totalorder %s25, 1
        %s381 = scalar_select %p380, %s25, 1
        %s382 = smul.addr %s381, 2
        %s383 = smul.addr %s382, 8
        %s384 = scalar_lea.vmem %s0, %s383
        %v385 = vld [vmem:[%s384] sm:$0xff]
        %v386 = vld [vmem:[%s384 + $0x8] sm:$0xff]
        %v387 = vld [vmem:[%s1] sm:$0x1]
        %v388 = vld [vmem:[%s2] sm:$0x1]
        %389 = vadd.xlane.f32.xlu0 %v385
        %v390 = vpop.xlane.xlu0 %389
        %391 = vadd.xlane.f32.xlu0 %v386
        %v392 = vpop.xlane.xlu0 %391
        %v393 = vrcp.pop 128.0
        %v394 = vmul.f32 %v390, %v393
        %v395 = vmul.f32 %v392, %v393
        %v396 = vsub.f32 %v385, %v394
        %v397 = vsub.f32 %v386, %v395
        %v398 = vmul.f32 %v396, %v396
        %v399 = vmul.f32 %v397, %v397
        %400 = vadd.xlane.f32.xlu0 %v398
        %v401 = vpop.xlane.xlu0 %400
        %402 = vadd.xlane.f32.xlu0 %v399
        %v403 = vpop.xlane.xlu0 %402
        %v404 = vmul.f32 %v401, %v393
        %v405 = vmul.f32 %v403, %v393
        %v406 = vadd.f32 %v404, 1e-05
        %v407 = vadd.f32 %v405, 1e-05
        %v408 = vrsqrt.pop %v406
        %v409 = vrsqrt.pop %v407
        %v410 = vmul.f32 %v396, %v408
        %v411 = vmul.f32 %v397, %v409
        %v413 = vlaneseq
        %v414 = vshrl.u32 %v413, 7
        %v415 = vsub.s32 0, %v414
        %v416 = vrot.slane %v387, %v415
        %v418 = vmul.f32 %v410, %v416
        %v419 = vmul.f32 %v411, %v416
        %v421 = vlaneseq
        %v422 = vshrl.u32 %v421, 7
        %v423 = vsub.s32 0, %v422
        %v424 = vrot.slane %v388, %v423
        %v426 = vadd.f32 %v418, %v424
        %v427 = vadd.f32 %v419, %v424
        %v428 = vld [vmem:[%s3] sm:$0xff]
        %v429 = vld [vmem:[%s3 + $0x8] sm:$0xff]
        %v430 = vld [vmem:[%s4] sm:$0xff]
        %v431 = vld [vmem:[%s4 + $0x8] sm:$0xff]
        %v432 = vld [vmem:[%s4 + $0x10] sm:$0xff]
        %v433 = vld [vmem:[%s4 + $0x18] sm:$0xff]
        %435 = vset.pattern.permute.xlu0 0
        %436 = vperm.xlu0 %435, %v430
        %v437 = vpop.permute.xlu0 %436
        %440 = vset.pattern.permute.xlu0 0
        %441 = vperm.xlu0 %440, %v431
        %v442 = vpop.permute.xlu0 %441
        %445 = vset.pattern.permute.xlu0 0
        %446 = vperm.xlu0 %445, %v432
        %v447 = vpop.permute.xlu0 %446
        %450 = vset.pattern.permute.xlu0 0
        %451 = vperm.xlu0 %450, %v433
        %v452 = vpop.permute.xlu0 %451
        %454 = vxpose.xlu0.b32.start [1/16] %v428, 128
        %455 = vxpose.xlu0.b32.cont [2/16] %v429, 128
        %456 = vxpose.xlu0.b32.cont [3/16] 0.0, 128
        %457 = vxpose.xlu0.b32.cont [4/16] 0.0, 128
        %458 = vxpose.xlu0.b32.cont [5/16] 0.0, 128
        %459 = vxpose.xlu0.b32.cont [6/16] 0.0, 128
        %460 = vxpose.xlu0.b32.cont [7/16] 0.0, 128
        %461 = vxpose.xlu0.b32.cont [8/16] 0.0, 128
        %462 = vxpose.xlu0.b32.cont [9/16] 0.0, 128
        %463 = vxpose.xlu0.b32.cont [10/16] 0.0, 128
        %464 = vxpose.xlu0.b32.cont [11/16] 0.0, 128
        %465 = vxpose.xlu0.b32.cont [12/16] 0.0, 128
        %466 = vxpose.xlu0.b32.cont [13/16] 0.0, 128
        %467 = vxpose.xlu0.b32.cont [14/16] 0.0, 128
        %468 = vxpose.xlu0.b32.cont [15/16] 0.0, 128
        %469 = vxpose.xlu0.b32.end [16/16] 0.0, 128
        %v470 = vpop.trf.xlu0
        %v471 = vpop.trf.xlu0
        %v472 = vpop.trf.xlu0
        %v473 = vpop.trf.xlu0
        %v474 = vpop.trf.xlu0
        %v475 = vpop.trf.xlu0
        %v476 = vpop.trf.xlu0
        %v477 = vpop.trf.xlu0
        %v478 = vpop.trf.xlu0
        %v479 = vpop.trf.xlu0
        %v480 = vpop.trf.xlu0
        %v481 = vpop.trf.xlu0
        %v482 = vpop.trf.xlu0
        %v483 = vpop.trf.xlu0
        %v484 = vpop.trf.xlu0
        %v485 = vpop.trf.xlu0
        %vm486 = vcmask 130048
        %v488 = vsel %vm486, %v470, 0
        %v491 = vsel %vm486, %v471, 0
        %v494 = vsel %vm486, %v472, 0
        %v497 = vsel %vm486, %v473, 0
        %499 = vmatprep.subr.mxu0 0.0
        %500 = vmatpush1.msra.mxu0 %v426
        %501 = vmatprep.subr.mxu0 0.0
        %502 = vmatpush1.msra.mxu0 %v427
        %503 = vmatprep.subr.mxu0 0.0
        %504 = vmatpush1.msra.mxu0 0.0
        %505 = vmatprep.subr.mxu0 0.0
        %506 = vmatpush1.msra.mxu0 0.0
        %507 = vmatprep.subr.mxu0 0.0
        %508 = vmatpush1.msra.mxu0 0.0
        %509 = vmatprep.subr.mxu0 0.0
        %510 = vmatpush1.msra.mxu0 0.0
        %511 = vmatprep.subr.mxu0 0.0
        %512 = vmatpush1.msra.mxu0 0.0
        %513 = vmatprep.subr.mxu0 0.0
        %514 = vmatpush1.msra.mxu0 0.0
        %515 = vmatprep.subr.mxu0 0.0
        %516 = vmatpush1.msra.mxu0 0.0
        %517 = vmatprep.subr.mxu0 0.0
        %518 = vmatpush1.msra.mxu0 0.0
        %519 = vmatprep.subr.mxu0 0.0
        %520 = vmatpush1.msra.mxu0 0.0
        %521 = vmatprep.subr.mxu0 0.0
        %522 = vmatpush1.msra.mxu0 0.0
        %523 = vmatprep.subr.mxu0 0.0
        %524 = vmatpush1.msra.mxu0 0.0
        %525 = vmatprep.subr.mxu0 0.0
        %526 = vmatpush1.msra.mxu0 0.0
        %527 = vmatprep.subr.mxu0 0.0
        %528 = vmatpush1.msra.mxu0 0.0
        %529 = vmatprep.subr.mxu0 0.0
        %530 = vmatpush1.msra.mxu0 0.0
        %531 = vmatprep.subr.mxu0 0.0
        %532 = vmatpush1.msra.mxu0 0.0
        %533 = vmatprep.subr.mxu0 0.0
        %534 = vmatpush1.msra.mxu0 0.0
        %535 = vmatprep.subr.mxu0 0.0
        %536 = vmatpush1.msra.mxu0 0.0
        %537 = vmatprep.subr.mxu0 0.0
        %538 = vmatpush1.msra.mxu0 0.0
        %539 = vmatprep.subr.mxu0 0.0
        %540 = vmatpush1.msra.mxu0 0.0
        %541 = vmatprep.subr.mxu0 0.0
        %542 = vmatpush1.msra.mxu0 0.0
        %543 = vmatprep.subr.mxu0 0.0
        %544 = vmatpush1.msra.mxu0 0.0
        %545 = vmatprep.subr.mxu0 0.0
        %546 = vmatpush1.msra.mxu0 0.0
        %547 = vmatprep.subr.mxu0 0.0
        %548 = vmatpush1.msra.mxu0 0.0
        %549 = vmatprep.subr.mxu0 0.0
        %550 = vmatpush1.msra.mxu0 0.0
        %551 = vmatprep.subr.mxu0 0.0
        %552 = vmatpush1.msra.mxu0 0.0
        %553 = vmatprep.subr.mxu0 0.0
        %554 = vmatpush1.msra.mxu0 0.0
        %555 = vmatprep.subr.mxu0 0.0
        %556 = vmatpush1.msra.mxu0 0.0
        %557 = vmatprep.subr.mxu0 0.0
        %558 = vmatpush1.msra.mxu0 0.0
        %559 = vmatprep.subr.mxu0 0.0
        %560 = vmatpush1.msra.mxu0 0.0
        %561 = vmatprep.subr.mxu0 0.0
        %562 = vmatpush1.msra.mxu0 0.0
        %563 = vmatprep.mubr.f32.mxu0 0.0
        %564 = vmatmul.mubr.f32.gmra.mrb[0].mxu0 %v488
        %v565 = vpop.f32.mrb[0].mxu0
        %v566 = vadd.f32 %v437, %v565
        %v567 = vpop.f32.mrb[0].mxu0
        %568 = vmatprep.mubr.f32.mxu0 0.0
        %569 = vmatmul.mubr.f32.gmra.mrb[0].mxu0 %v491
        %v570 = vpop.f32.mrb[0].mxu0
        %v571 = vadd.f32 %v442, %v570
        %v572 = vpop.f32.mrb[0].mxu0
        %573 = vmatprep.mubr.f32.mxu0 0.0
        %574 = vmatmul.mubr.f32.gmra.mrb[0].mxu0 %v494
        %v575 = vpop.f32.mrb[0].mxu0
        %v576 = vadd.f32 %v447, %v575
        %v577 = vpop.f32.mrb[0].mxu0
        %578 = vmatprep.mubr.f32.mxu0 0.0
        %579 = vmatmul.mubr.f32.gmra.mrb[0].mxu0 %v497
        %v580 = vpop.f32.mrb[0].mxu0
        %v581 = vadd.f32 %v452, %v580
        %v582 = vpop.f32.mrb[0].mxu0
        %583 = vdwg.mxu0
        %v584 = vmul.f32 %v566, 0.5
        %v585 = vmul.f32 %v571, 0.5
        %v586 = vmul.f32 %v576, 0.5
        %v587 = vmul.f32 %v581, 0.5
        %v588 = vmul.f32 %v566, 0.70710677
        %v589 = vmul.f32 %v571, 0.70710677
        %v590 = vmul.f32 %v576, 0.70710677
        %v591 = vmul.f32 %v581, 0.70710677
        %v592 = verf.f32.pop %v588
        %v593 = verf.f32.pop %v589
        %v594 = verf.f32.pop %v590
        %v595 = verf.f32.pop %v591
        %v596 = vadd.f32 %v592, 1.0
        %v597 = vadd.f32 %v593, 1.0
        %v598 = vadd.f32 %v594, 1.0
        %v599 = vadd.f32 %v595, 1.0
        %v600 = vmul.f32 %v584, %v596
        %v601 = vmul.f32 %v585, %v597
        %v602 = vmul.f32 %v586, %v598
        %v603 = vmul.f32 %v587, %v599
        %v604 = vld [vmem:[%s5] sm:$0xff]
        %v605 = vld [vmem:[%s5 + $0x8] sm:$0xff]
        %v606 = vld [vmem:[%s5 + $0x10] sm:$0xff]
        %v607 = vld [vmem:[%s5 + $0x18] sm:$0xff]
        %608 = vxpose.xlu0.b32.start [1/16] %v604, 128
        %609 = vxpose.xlu0.b32.cont [2/16] %v605, 128
        %610 = vxpose.xlu0.b32.cont [3/16] %v606, 128
        %611 = vxpose.xlu0.b32.cont [4/16] %v607, 128
        %612 = vxpose.xlu0.b32.cont [5/16] 0.0, 128
        %613 = vxpose.xlu0.b32.cont [6/16] 0.0, 128
        %614 = vxpose.xlu0.b32.cont [7/16] 0.0, 128
        %615 = vxpose.xlu0.b32.cont [8/16] 0.0, 128
        %616 = vxpose.xlu0.b32.cont [9/16] 0.0, 128
        %617 = vxpose.xlu0.b32.cont [10/16] 0.0, 128
        %618 = vxpose.xlu0.b32.cont [11/16] 0.0, 128
        %619 = vxpose.xlu0.b32.cont [12/16] 0.0, 128
        %620 = vxpose.xlu0.b32.cont [13/16] 0.0, 128
        %621 = vxpose.xlu0.b32.cont [14/16] 0.0, 128
        %622 = vxpose.xlu0.b32.cont [15/16] 0.0, 128
        %623 = vxpose.xlu0.b32.end [16/16] 0.0, 128
        %v624 = vpop.trf.xlu0
        %v625 = vpop.trf.xlu0
        %v626 = vpop.trf.xlu0
        %v627 = vpop.trf.xlu0
        %v628 = vpop.trf.xlu0
        %v629 = vpop.trf.xlu0
        %v630 = vpop.trf.xlu0
        %v631 = vpop.trf.xlu0
        %v632 = vpop.trf.xlu0
        %v633 = vpop.trf.xlu0
        %v634 = vpop.trf.xlu0
        %v635 = vpop.trf.xlu0
        %v636 = vpop.trf.xlu0
        %v637 = vpop.trf.xlu0
        %v638 = vpop.trf.xlu0
        %v639 = vpop.trf.xlu0
        %vm640 = vcmask 261120
        %v642 = vsel %vm640, %v624, 0
        %v645 = vsel %vm640, %v625, 0
        %647 = vmatprep.subr.mxu0 0.0
        %648 = vmatpush1.msra.mxu0 %v600
        %649 = vmatprep.subr.mxu0 0.0
        %650 = vmatpush1.msra.mxu0 %v601
        %651 = vmatprep.subr.mxu0 0.0
        %652 = vmatpush1.msra.mxu0 %v602
        %653 = vmatprep.subr.mxu0 0.0
        %654 = vmatpush1.msra.mxu0 %v603
        %655 = vmatprep.subr.mxu0 0.0
        %656 = vmatpush1.msra.mxu0 0.0
        %657 = vmatprep.subr.mxu0 0.0
        %658 = vmatpush1.msra.mxu0 0.0
        %659 = vmatprep.subr.mxu0 0.0
        %660 = vmatpush1.msra.mxu0 0.0
        %661 = vmatprep.subr.mxu0 0.0
        %662 = vmatpush1.msra.mxu0 0.0
        %663 = vmatprep.subr.mxu0 0.0
        %664 = vmatpush1.msra.mxu0 0.0
        %665 = vmatprep.subr.mxu0 0.0
        %666 = vmatpush1.msra.mxu0 0.0
        %667 = vmatprep.subr.mxu0 0.0
        %668 = vmatpush1.msra.mxu0 0.0
        %669 = vmatprep.subr.mxu0 0.0
        %670 = vmatpush1.msra.mxu0 0.0
        %671 = vmatprep.subr.mxu0 0.0
        %672 = vmatpush1.msra.mxu0 0.0
        %673 = vmatprep.subr.mxu0 0.0
        %674 = vmatpush1.msra.mxu0 0.0
        %675 = vmatprep.subr.mxu0 0.0
        %676 = vmatpush1.msra.mxu0 0.0
        %677 = vmatprep.subr.mxu0 0.0
        %678 = vmatpush1.msra.mxu0 0.0
        %679 = vmatprep.subr.mxu0 0.0
        %680 = vmatpush1.msra.mxu0 0.0
        %681 = vmatprep.subr.mxu0 0.0
        %682 = vmatpush1.msra.mxu0 0.0
        %683 = vmatprep.subr.mxu0 0.0
        %684 = vmatpush1.msra.mxu0 0.0
        %685 = vmatprep.subr.mxu0 0.0
        %686 = vmatpush1.msra.mxu0 0.0
        %687 = vmatprep.subr.mxu0 0.0
        %688 = vmatpush1.msra.mxu0 0.0
        %689 = vmatprep.subr.mxu0 0.0
        %690 = vmatpush1.msra.mxu0 0.0
        %691 = vmatprep.subr.mxu0 0.0
        %692 = vmatpush1.msra.mxu0 0.0
        %693 = vmatprep.subr.mxu0 0.0
        %694 = vmatpush1.msra.mxu0 0.0
        %695 = vmatprep.subr.mxu0 0.0
        %696 = vmatpush1.msra.mxu0 0.0
        %697 = vmatprep.subr.mxu0 0.0
        %698 = vmatpush1.msra.mxu0 0.0
        %699 = vmatprep.subr.mxu0 0.0
        %700 = vmatpush1.msra.mxu0 0.0
        %701 = vmatprep.subr.mxu0 0.0
        %702 = vmatpush1.msra.mxu0 0.0
        %703 = vmatprep.subr.mxu0 0.0
        %704 = vmatpush1.msra.mxu0 0.0
        %705 = vmatprep.subr.mxu0 0.0
        %706 = vmatpush1.msra.mxu0 0.0
        %707 = vmatprep.subr.mxu0 0.0
        %708 = vmatpush1.msra.mxu0 0.0
        %709 = vmatprep.subr.mxu0 0.0
        %710 = vmatpush1.msra.mxu0 0.0
        %711 = vmatprep.mubr.f32.mxu0 0.0
        %712 = vmatmul.mubr.f32.gmra.mrb[0].mxu0 %v642
        %v713 = vpop.f32.mrb[0].mxu0
        %v714 = vadd.f32 0.0, %v713
        %v715 = vpop.f32.mrb[0].mxu0
        %716 = vmatprep.mubr.f32.mxu0 0.0
        %717 = vmatmul.mubr.f32.gmra.mrb[0].mxu0 %v645
        %v718 = vpop.f32.mrb[0].mxu0
        %v719 = vadd.f32 0.0, %v718
        %v720 = vpop.f32.mrb[0].mxu0
        %721 = vdwg.mxu0
        %v722 = vadd.f32 %v385, %v714
        %v723 = vadd.f32 %v386, %v719
        %v724 = vld [vmem:[%s6] sm:$0xff]
        %v725 = vld [vmem:[%s6 + $0x8] sm:$0xff]
        %727 = vset.pattern.permute.xlu0 0
        %728 = vperm.xlu0 %727, %v724
        %v729 = vpop.permute.xlu0 %728
        %732 = vset.pattern.permute.xlu0 0
        %733 = vperm.xlu0 %732, %v725
        %v734 = vpop.permute.xlu0 %733
        %v736 = vadd.f32 %v722, %v729
        %v737 = vadd.f32 %v723, %v734
        %738 = vadd.xlane.f32.xlu0 %v736
        %v739 = vpop.xlane.xlu0 %738
        %740 = vadd.xlane.f32.xlu0 %v737
        %v741 = vpop.xlane.xlu0 %740
        %v742 = vmul.f32 %v739, %v393
        %v743 = vmul.f32 %v741, %v393
        %v744 = vsub.f32 %v736, %v742
        %v745 = vsub.f32 %v737, %v743
        %v746 = vmul.f32 %v744, %v744
        %v747 = vmul.f32 %v745, %v745
        %748 = vadd.xlane.f32.xlu0 %v746
        %v749 = vpop.xlane.xlu0 %748
        %750 = vadd.xlane.f32.xlu0 %v747
        %v751 = vpop.xlane.xlu0 %750
        %v752 = vmul.f32 %v749, %v393
        %v753 = vmul.f32 %v751, %v393
        %v754 = vadd.f32 %v752, 1e-05
        %v755 = vadd.f32 %v753, 1e-05
        %v756 = vrsqrt.pop %v754
        %v757 = vrsqrt.pop %v755
        %v758 = vmul.f32 %v744, %v756
        %v759 = vmul.f32 %v745, %v757
        %v760 = vmul.f32 %v758, %v416
        %v761 = vmul.f32 %v759, %v416
        %v762 = vadd.f32 %v760, %v424
        %v763 = vadd.f32 %v761, %v424
        %v764 = vld [vmem:[%s7] sm:$0xff]
        %v765 = vld [vmem:[%s7 + $0x8] sm:$0xff]
        %v766 = vld [vmem:[%s7 + $0x10] sm:$0xff]
        %v767 = vld [vmem:[%s7 + $0x18] sm:$0xff]
        %v768 = vld [vmem:[%s7 + $0x20] sm:$0xff]
        %v769 = vld [vmem:[%s7 + $0x28] sm:$0xff]
        %v770 = vld [vmem:[%s7 + $0x30] sm:$0xff]
        %v771 = vld [vmem:[%s7 + $0x38] sm:$0xff]
        %v772 = vld [vmem:[%s7 + $0x40] sm:$0xff]
        %v773 = vld [vmem:[%s7 + $0x48] sm:$0xff]
        %v774 = vld [vmem:[%s7 + $0x50] sm:$0xff]
        %v775 = vld [vmem:[%s7 + $0x58] sm:$0xff]
        %v776 = vld [vmem:[%s7 + $0x60] sm:$0xff]
        %v777 = vld [vmem:[%s7 + $0x68] sm:$0xff]
        %v778 = vld [vmem:[%s7 + $0x70] sm:$0xff]
        %v779 = vld [vmem:[%s7 + $0x78] sm:$0xff]
        %v780 = vld [vmem:[%s8] sm:$0x1]
        %v782 = vlaneseq
        %v783 = vshrl.u32 %v782, 7
        %v784 = vsub.s32 0, %v783
        %v785 = vrot.slane %v780, %v784
        %787 = vmatprep.subr.mxu0 0.0
        %788 = vmatpush1.msra.mxu0 %v764
        %789 = vmatprep.subr.mxu0 0.0
        %790 = vmatpush1.msra.mxu0 %v765
        %791 = vmatprep.subr.mxu0 0.0
        %792 = vmatpush1.msra.mxu0 %v766
        %793 = vmatprep.subr.mxu0 0.0
        %794 = vmatpush1.msra.mxu0 %v767
        %795 = vmatprep.subr.mxu0 0.0
        %796 = vmatpush1.msra.mxu0 %v768
        %797 = vmatprep.subr.mxu0 0.0
        %798 = vmatpush1.msra.mxu0 %v769
        %799 = vmatprep.subr.mxu0 0.0
        %800 = vmatpush1.msra.mxu0 %v770
        %801 = vmatprep.subr.mxu0 0.0
        %802 = vmatpush1.msra.mxu0 %v771
        %803 = vmatprep.subr.mxu0 0.0
        %804 = vmatpush1.msra.mxu0 %v772
        %805 = vmatprep.subr.mxu0 0.0
        %806 = vmatpush1.msra.mxu0 %v773
        %807 = vmatprep.subr.mxu0 0.0
        %808 = vmatpush1.msra.mxu0 %v774
        %809 = vmatprep.subr.mxu0 0.0
        %810 = vmatpush1.msra.mxu0 %v775
        %811 = vmatprep.subr.mxu0 0.0
        %812 = vmatpush1.msra.mxu0 %v776
        %813 = vmatprep.subr.mxu0 0.0
        %814 = vmatpush1.msra.mxu0 %v777
        %815 = vmatprep.subr.mxu0 0.0
        %816 = vmatpush1.msra.mxu0 %v778
        %817 = vmatprep.subr.mxu0 0.0
        %818 = vmatpush1.msra.mxu0 %v779
        %819 = vmatprep.subr.mxu0 0.0
        %820 = vmatpush1.msra.mxu0 0.0
        %821 = vmatprep.subr.mxu0 0.0
        %822 = vmatpush1.msra.mxu0 0.0
        %823 = vmatprep.subr.mxu0 0.0
        %824 = vmatpush1.msra.mxu0 0.0
        %825 = vmatprep.subr.mxu0 0.0
        %826 = vmatpush1.msra.mxu0 0.0
        %827 = vmatprep.subr.mxu0 0.0
        %828 = vmatpush1.msra.mxu0 0.0
        %829 = vmatprep.subr.mxu0 0.0
        %830 = vmatpush1.msra.mxu0 0.0
        %831 = vmatprep.subr.mxu0 0.0
        %832 = vmatpush1.msra.mxu0 0.0
        %833 = vmatprep.subr.mxu0 0.0
        %834 = vmatpush1.msra.mxu0 0.0
        %835 = vmatprep.subr.mxu0 0.0
        %836 = vmatpush1.msra.mxu0 0.0
        %837 = vmatprep.subr.mxu0 0.0
        %838 = vmatpush1.msra.mxu0 0.0
        %839 = vmatprep.subr.mxu0 0.0
        %840 = vmatpush1.msra.mxu0 0.0
        %841 = vmatprep.subr.mxu0 0.0
        %842 = vmatpush1.msra.mxu0 0.0
        %843 = vmatprep.subr.mxu0 0.0
        %844 = vmatpush1.msra.mxu0 0.0
        %845 = vmatprep.subr.mxu0 0.0
        %846 = vmatpush1.msra.mxu0 0.0
        %847 = vmatprep.subr.mxu0 0.0
        %848 = vmatpush1.msra.mxu0 0.0
        %849 = vmatprep.subr.mxu0 0.0
        %850 = vmatpush1.msra.mxu0 0.0
        %851 = vmatprep.mubr.f32.mxu0 0.0
        %852 = vmatmul.mubr.f32.gmra.mrb[0].mxu0 %v762
        %v853 = vpop.f32.mrb[0].mxu0
        %v854 = vadd.f32 %v785, %v853
        %v855 = vpop.f32.mrb[0].mxu0
        %856 = vmatprep.mubr.f32.mxu0 0.0
        %857 = vmatmul.mubr.f32.gmra.mrb[0].mxu0 %v763
        %v858 = vpop.f32.mrb[0].mxu0
        %v859 = vadd.f32 %v785, %v858
        %v860 = vpop.f32.mrb[0].mxu0
        %861 = vdwg.mxu0
        %v862 = vmul.f32 %v854, 0.5
        %v863 = vmul.f32 %v859, 0.5
        %v864 = vmul.f32 %v854, 0.70710677
        %v865 = vmul.f32 %v859, 0.70710677
        %v866 = verf.f32.pop %v864
        %v867 = verf.f32.pop %v865
        %v868 = vadd.f32 %v866, 1.0
        %v869 = vadd.f32 %v867, 1.0
        %v870 = vmul.f32 %v862, %v868
        %v871 = vmul.f32 %v863, %v869
        %v872 = vld [vmem:[%s9] sm:$0xff]
        %v873 = vld [vmem:[%s9 + $0x8] sm:$0xff]
        %v874 = vld [vmem:[%s9 + $0x10] sm:$0xff]
        %v875 = vld [vmem:[%s9 + $0x18] sm:$0xff]
        %v876 = vld [vmem:[%s9 + $0x20] sm:$0xff]
        %v877 = vld [vmem:[%s9 + $0x28] sm:$0xff]
        %v878 = vld [vmem:[%s9 + $0x30] sm:$0xff]
        %v879 = vld [vmem:[%s9 + $0x38] sm:$0xff]
        %v880 = vld [vmem:[%s10] sm:$0x1]
        %v882 = vlaneseq
        %v883 = vshrl.u32 %v882, 7
        %v884 = vsub.s32 0, %v883
        %v885 = vrot.slane %v880, %v884
        %vm887 = vcmask 523264
        %v889 = vsel %vm887, %v870, 0
        %v892 = vsel %vm887, %v871, 0
        %894 = vmatprep.subr.mxu0 0.0
        %895 = vmatpush1.msra.mxu0 %v872
        %896 = vmatprep.subr.mxu0 0.0
        %897 = vmatpush1.msra.mxu0 %v873
        %898 = vmatprep.subr.mxu0 0.0
        %899 = vmatpush1.msra.mxu0 %v874
        %900 = vmatprep.subr.mxu0 0.0
        %901 = vmatpush1.msra.mxu0 %v875
        %902 = vmatprep.subr.mxu0 0.0
        %903 = vmatpush1.msra.mxu0 %v876
        %904 = vmatprep.subr.mxu0 0.0
        %905 = vmatpush1.msra.mxu0 %v877
        %906 = vmatprep.subr.mxu0 0.0
        %907 = vmatpush1.msra.mxu0 %v878
        %908 = vmatprep.subr.mxu0 0.0
        %909 = vmatpush1.msra.mxu0 %v879
        %910 = vmatprep.subr.mxu0 0.0
        %911 = vmatpush1.msra.mxu0 0.0
        %912 = vmatprep.subr.mxu0 0.0
        %913 = vmatpush1.msra.mxu0 0.0
        %914 = vmatprep.subr.mxu0 0.0
        %915 = vmatpush1.msra.mxu0 0.0
        %916 = vmatprep.subr.mxu0 0.0
        %917 = vmatpush1.msra.mxu0 0.0
        %918 = vmatprep.subr.mxu0 0.0
        %919 = vmatpush1.msra.mxu0 0.0
        %920 = vmatprep.subr.mxu0 0.0
        %921 = vmatpush1.msra.mxu0 0.0
        %922 = vmatprep.subr.mxu0 0.0
        %923 = vmatpush1.msra.mxu0 0.0
        %924 = vmatprep.subr.mxu0 0.0
        %925 = vmatpush1.msra.mxu0 0.0
        %926 = vmatprep.subr.mxu0 0.0
        %927 = vmatpush1.msra.mxu0 0.0
        %928 = vmatprep.subr.mxu0 0.0
        %929 = vmatpush1.msra.mxu0 0.0
        %930 = vmatprep.subr.mxu0 0.0
        %931 = vmatpush1.msra.mxu0 0.0
        %932 = vmatprep.subr.mxu0 0.0
        %933 = vmatpush1.msra.mxu0 0.0
        %934 = vmatprep.subr.mxu0 0.0
        %935 = vmatpush1.msra.mxu0 0.0
        %936 = vmatprep.subr.mxu0 0.0
        %937 = vmatpush1.msra.mxu0 0.0
        %938 = vmatprep.subr.mxu0 0.0
        %939 = vmatpush1.msra.mxu0 0.0
        %940 = vmatprep.subr.mxu0 0.0
        %941 = vmatpush1.msra.mxu0 0.0
        %942 = vmatprep.subr.mxu0 0.0
        %943 = vmatpush1.msra.mxu0 0.0
        %944 = vmatprep.subr.mxu0 0.0
        %945 = vmatpush1.msra.mxu0 0.0
        %946 = vmatprep.subr.mxu0 0.0
        %947 = vmatpush1.msra.mxu0 0.0
        %948 = vmatprep.subr.mxu0 0.0
        %949 = vmatpush1.msra.mxu0 0.0
        %950 = vmatprep.subr.mxu0 0.0
        %951 = vmatpush1.msra.mxu0 0.0
        %952 = vmatprep.subr.mxu0 0.0
        %953 = vmatpush1.msra.mxu0 0.0
        %954 = vmatprep.subr.mxu0 0.0
        %955 = vmatpush1.msra.mxu0 0.0
        %956 = vmatprep.subr.mxu0 0.0
        %957 = vmatpush1.msra.mxu0 0.0
        %958 = vmatprep.mubr.f32.mxu0 0.0
        %959 = vmatmul.mubr.f32.gmra.mrb[0].mxu0 %v889
        %v960 = vpop.f32.mrb[0].mxu0
        %v961 = vadd.f32 %v885, %v960
        %v962 = vpop.f32.mrb[0].mxu0
        %963 = vmatprep.mubr.f32.mxu0 0.0
        %964 = vmatmul.mubr.f32.gmra.mrb[0].mxu0 %v892
        %v965 = vpop.f32.mrb[0].mxu0
        %v966 = vadd.f32 %v885, %v965
        %v967 = vpop.f32.mrb[0].mxu0
        %968 = vdwg.mxu0
        %v969 = vadd.f32 %v736, %v961
        %v970 = vadd.f32 %v737, %v966
        %971 = vst [vmem:[%s379] sm:$0xff] %v969
        %972 = vst [vmem:[%s379 + $0x8] sm:$0xff] %v970
        %s973 = sand.u32 %s269, 1
        %s974 = scalar_lea.sflag [#allocation3], %s973
        %s975 = sand.u32 %s269, 1
        %s976 = smul.addr %s975, 16
        %s977 = scalar_lea.vmem [#allocation2], %s976
        // Predicated region
        $region65: #{mixer_block.1} parent=63 // pred_check
          %p978 = pneg %p279
        $region66: #{mixer_block.1} parent=63 // pred_check_branch
          %980 = sbr.rel (%p978) target = $region68
        $region67: #{mixer_block.1} parent=63 // pred_region
          %s982 = ssub.s32 256, 256
          %983 = vsyncadd %s974, %s982
          %s984 = smul.addr %s25, 2
          %s985 = smul.addr %s984, 128
          %s986 = scalar_lea.hbm %s11, %s985
          %s987 = sshll.u32 %s977, 4
          %s988 = int_to_ptr.vmem [resolvable:$true] %s987
          %993 = dma.vmem_to_hbm [thread:$0]  %s988, 256, %s986, %s974, 128, 128, 8
        $region68: #{mixer_block.1} parent=63 // pred_fallthru
          _
      $region64: #{mixer_block.1} parent=5 // pred_fallthru
        _
      %p994 = scmp.le.s32.totalorder 2, %s20
      // Predicated region
      $region69: #{mixer_block.1} parent=5 // pred_check
        %p995 = pneg %p994
      $region70: #{mixer_block.1} parent=5 // pred_check_branch
        %997 = sbr.rel (%p995) target = $region72
      $region71: #{mixer_block.1} parent=5 // pred_region
        %s998 = ssub.s32 %s20, 2
        // Predicated region
        $region73: #{mixer_block.1} parent=71 // pred_check
          %p999 = pneg %p285
        $region74: #{mixer_block.1} parent=71 // pred_check_branch
          %1001 = sbr.rel (%p999) target = $region76
        $region75: #{mixer_block.1} parent=71 // pred_region
          %s1002 = sand.u32 %s270, 1
          %s1003 = scalar_lea.sflag [#allocation3], %s1002
          %s1004 = sand.u32 %s270, 1
          %s1005 = smul.addr %s1004, 16
          %s1006 = scalar_lea.vmem [#allocation2], %s1005
          %1007 = dma.done %s1003, 256
        $region76: #{mixer_block.1} parent=71 // pred_fallthru
          _
      $region72: #{mixer_block.1} parent=5 // pred_fallthru
        _
    $region6: #{mixer_block.1} parent=1 // loop_footer
      %s24 = sadd.s32 1, %s20
    $region7: #{mixer_block.1} parent=1 // loop_footer_branch
      %19 = sbr.rel target = $region3
    $region8: #{mixer_block.1} parent=1 // loop_exit
      _
    %1008 = vsyncpa [#allocation3], 1
    %s1009 = scalar_lea.sflag [#allocation3], 1
    %1010 = vsyncpa %s1009, 1

</llo_original>
